<compile_context>
chip_gen: v7x
topology: tpu7x:2x2x1
jax: 0.10.0
libtpu: 0.0.40
codegen_flags: <defaults>
</compile_context>

<pallas_src>
import math

import jax
import jax.numpy as jnp
from jax.experimental import pallas as pl
from jax.experimental.pallas import tpu as pltpu

_PACK = 4  # row-packing factor: (N, 10) -> (N/4, 40); output tile 4*64 = 256 lanes


def _linear_kernel(x_ref, w_ref, b_ref, o_ref):
    # x_ref: (TM, PACK*C_in)          packed node-feature rows
    # w_ref: (PACK*C_in, PACK*C_out)  block-diagonal kron(I_PACK, W^T)
    # b_ref: (1, PACK*C_out)          bias tiled PACK times
    # o_ref: (TM, PACK*C_out)         lane-dense (multiple of 128) output tile
    acc = jnp.dot(x_ref[...], w_ref[...], preferred_element_type=jnp.float32)
    o_ref[...] = (acc + b_ref[...].astype(jnp.float32)).astype(o_ref.dtype)


def _round_up(v, m):
    return ((v + m - 1) // m) * m


def heterogeneous_graph_encoder(x, weight, bias, *, tm=16384, out_dtype=None):
    """Pallas implementation of nn.Linear(in_channels, out_channels) forward.

    Note: weight/bias are cast to x.dtype before the matmul (MXU accumulation
    is still f32).  Keep x in f32 for exact nn.Linear parity.
    """
    n, c_in = x.shape
    c_out, c_in_w = weight.shape
    assert c_in == c_in_w, (c_in, c_in_w)
    dtype = x.dtype
    out_dtype = dtype if out_dtype is None else out_dtype

    if n == 0:  # empty node set
        return jnp.zeros((0, c_out), dtype=out_dtype)

    r = _PACK
    # Pack r adjacent node rows into one lane-dense row.  Pad x only up to a
    # multiple of r (<= r-1 rows, and only when needed); tile-boundary padding
    # is handled by Pallas' partial last block, not by a wrapper-side jnp.pad.
    n_r = _round_up(n, r)
    x_r = x if n_r == n else jnp.pad(x, ((0, n_r - n), (0, 0)))
    n_pk = n_r // r                       # packed row count
    x_pk = x_r.reshape(n_pk, r * c_in)    # free (row-major) reshape

    # Packed-row tile: big (multiple of 8 sublanes), but a single full-array
    # block for small problems (block == array dims is always legal).
    tm_pk_max = max(8, _round_up(max(tm, r) // r, 8))
    if n_pk <= tm_pk_max:
        tm_pk = n_pk
        grid_len = 1
    else:
        tm_pk = tm_pk_max
        grid_len = pl.cdiv(n_pk, tm_pk)
        # Best-effort even grid so v7x's two TensorCores split the parallel axis.
        if grid_len % 2 == 1:
            tm_try = max(8, _round_up(pl.cdiv(n_pk, grid_len + 1), 8))
            if pl.cdiv(n_pk, tm_try) % 2 == 0:
                tm_pk = tm_try
                grid_len = pl.cdiv(n_pk, tm_pk)

    # Hoisted transpose + block-diagonal packing (built once in the wrapper,
    # grid-invariant inside the kernel; tiny, so double buffering is harmless).
    wt = weight.T.astype(dtype)                              # (C_in, C_out)
    w_pk = jnp.kron(jnp.eye(r, dtype=dtype), wt)             # (r*C_in, r*C_out)
    b_pk = jnp.tile(bias.astype(dtype), r).reshape(1, r * c_out)

    out_pk = pl.pallas_call(
        _linear_kernel,
        out_shape=jax.ShapeDtypeStruct((n_pk, r * c_out), out_dtype),
        grid_spec=pltpu.PrefetchScalarGridSpec(
            num_scalar_prefetch=0,
            grid=(grid_len,),
            in_specs=[
                pl.BlockSpec((tm_pk, r * c_in), lambda i: (i, 0)),      # x tile
                pl.BlockSpec((r * c_in, r * c_out), lambda i: (0, 0)),  # weight
                pl.BlockSpec((1, r * c_out), lambda i: (0, 0)),         # bias
            ],
            out_specs=pl.BlockSpec((tm_pk, r * c_out), lambda i: (i, 0)),
        ),
        compiler_params=pltpu.CompilerParams(
            dimension_semantics=("parallel",),
            vmem_limit_bytes=32 * 1024 * 1024,
        ),
    )(x_pk, w_pk, b_pk)

    # Undo the row packing; drop the <= r-1 padded rows.
    return out_pk.reshape(n_r, c_out)[:n]


if __name__ == "__main__":
    # Shapes implied by the module: in_channels=10 node features, out_channels=64.
    in_channels = 10
    out_channels = 64

    key = jax.random.PRNGKey(0)
    k_x, k_w, k_b = jax.random.split(key, 3)

    # Deterministic parameter init matching nn.Linear's default uniform range.
    bound = 1.0 / math.sqrt(in_channels)
    weight = jax.random.uniform(
        k_w, (out_channels, in_channels), minval=-bound, maxval=bound,
        dtype=jnp.float32)
    bias = jax.random.uniform(
        k_b, (out_channels,), minval=-bound, maxval=bound, dtype=jnp.float32)

    def check(num_nodes, tm=16384):
        kx = jax.random.fold_in(k_x, num_nodes)
        x = jax.random.normal(kx, (num_nodes, in_channels), dtype=jnp.float32)
        out = heterogeneous_graph_encoder(x, weight, bias, tm=tm)
        out = jax.block_until_ready(out)
        ref = x @ weight.T + bias
        assert out.shape == (num_nodes, out_channels), out.shape
        assert jnp.allclose(out, ref, atol=1e-5, rtol=1e-5), num_nodes
        return out

    # Main case (stand-in for torch.randn(len(unique_addresses), 10)):
    # single grid step, block == full array (no partial-tile masking).
    check(2000)
    # Multi-step path with a partial (masked) last tile and an even grid.
    check(20000, tm=4096)
    # Ragged path: N not a multiple of the packing factor (tiny 1-row pad).
    check(1003)

    print("KERNEL_OK")
</pallas_src>

<mosaic_0001>
module attributes {stable_mosaic.version = 11 : i64} {
  func.func @_linear_kernel(%arg0: i32, %arg1: memref<500x40xf32, #tpu.memory_space<vmem>>, %arg2: memref<40x256xf32, #tpu.memory_space<vmem>>, %arg3: memref<1x256xf32, #tpu.memory_space<vmem>>, %arg4: memref<500x256xf32, #tpu.memory_space<vmem>>) attributes {dimension_semantics = [#tpu.dimension_semantics<parallel>], iteration_bounds = array<i64: 1>, scalar_prefetch = 0 : i64, scratch_operands = 0 : i64, tpu.core_type = #tpu.core_type<tc>, window_params = [{transform_indices = @transform_0, window_bounds = array<i64: 500, 40>}, {pipeline_mode = #tpu.pipeline_mode<synchronous>, transform_indices = @transform_1, window_bounds = array<i64: 40, 256>}, {pipeline_mode = #tpu.pipeline_mode<synchronous>, transform_indices = @transform_2, window_bounds = array<i64: 1, 256>}, {transform_indices = @transform_3, window_bounds = array<i64: 500, 256>}]} {
    %c0 = arith.constant 0 : index
    %c0_0 = arith.constant 0 : index
    %0 = vector.load %arg1[%c0, %c0_0] : memref<500x40xf32, #tpu.memory_space<vmem>>, vector<500x40xf32>
    %c0_1 = arith.constant 0 : index
    %c0_2 = arith.constant 0 : index
    %1 = vector.load %arg2[%c0_1, %c0_2] : memref<40x256xf32, #tpu.memory_space<vmem>>, vector<40x256xf32>
    %cst = arith.constant dense<0.000000e+00> : vector<500x256xf32>
    %2 = tpu.matmul %0, %1, %cst {dimension_numbers = #tpu.dot_dimension_numbers<[1], [0], [0], [1], [0, 0, 1, 1], [], []>} : vector<500x40xf32>, vector<40x256xf32>, vector<500x256xf32> -> vector<500x256xf32>
    %c0_3 = arith.constant 0 : index
    %c0_4 = arith.constant 0 : index
    %3 = vector.load %arg3[%c0_3, %c0_4] : memref<1x256xf32, #tpu.memory_space<vmem>>, vector<1x256xf32>
    %4 = vector.broadcast %3 : vector<1x256xf32> to vector<500x256xf32>
    %5 = arith.addf %2, %4 : vector<500x256xf32>
    %c0_5 = arith.constant 0 : index
    %c0_6 = arith.constant 0 : index
    %6 = vector.load %arg4[%c0_5, %c0_6] : memref<500x256xf32, #tpu.memory_space<vmem>>, vector<500x256xf32>
    tpu.vector_store %arg4[%c0_5, %c0_6], %5 {strides = array<i32>} : memref<500x256xf32, #tpu.memory_space<vmem>>, vector<500x256xf32>,
    return
  }
  func.func @transform_0(%arg0: i32) -> (i32, i32) {
    %c0_i32 = arith.constant 0 : i32
    %c0_i32_0 = arith.constant 0 : i32
    return %arg0, %c0_i32 : i32, i32
  }
  func.func @transform_1(%arg0: i32) -> (i32, i32) {
    %c0_i32 = arith.constant 0 : i32
    %c0_i32_0 = arith.constant 0 : i32
    %c0_i32_1 = arith.constant 0 : i32
    return %c0_i32, %c0_i32_0 : i32, i32
  }
  func.func @transform_2(%arg0: i32) -> (i32, i32) {
    %c0_i32 = arith.constant 0 : i32
    %c0_i32_0 = arith.constant 0 : i32
    %c0_i32_1 = arith.constant 0 : i32
    return %c0_i32, %c0_i32_0 : i32, i32
  }
  func.func @transform_3(%arg0: i32) -> (i32, i32) {
    %c0_i32 = arith.constant 0 : i32
    %c0_i32_0 = arith.constant 0 : i32
    return %arg0, %c0_i32 : i32, i32
  }
}

</mosaic_0001>

<llo_original>
// kernel: tpu_custom_call.1
$region0: #{tpu_custom_call.1}
  #allocation0 [shape = 'u32[]', space=smem, size = 0x4, offset = 0x4, fixed_abs, tag = 'smem constant byte address 0x4 - core index']
  #allocation1 [shape = 'u32[144,128]{1,0:T(1,128)}', space=vmem, size = 0x12000, scoped, tag = 'internal scratch']
  %s0 = inlined_call_operand.vmem [shape: f32[500,40], index: 0, kind: input, shape index: {}]
  %s1 = inlined_call_operand.vmem [shape: f32[40,256], index: 1, kind: input, shape index: {}]
  %s2 = inlined_call_operand.vmem [shape: f32[1,256], index: 2, kind: input, shape index: {}]
  %s3 = inlined_call_operand.hbm [shape: f32[500,256], index: 3, kind: output, shape index: {}]
  %s4 = sld [smem:[#allocation0]]
  $region22: #{tpu_custom_call.1} parent=0
    _
  %s6 = ssub.s32 1, %s4
  %s7 = scalar_select 0, %s6, %s4
  $region1: #{tpu_custom_call.1} parent=0
    #allocation2 [shape = 'u8[516096]{0}', space=vmem, size = 0x7e000, scoped, tag = 'output window, operand 0, single buffered']
    #allocation3 [shape = 's32[1]{0}', space=sflag, size = 0x4, scoped, tag = 'scoped memory for tpu_custom_call.1']
    %8 = vsyncpa [#allocation3], 0
    // Predicated region
    $region2: #{tpu_custom_call.1} parent=1 // pred_check
      _
    $region3: #{tpu_custom_call.1} parent=1 // pred_check_branch
      %10 = sbr.rel (0) target = $region5
    $region4: #{tpu_custom_call.1} parent=1 // pred_region
      _
    $region5: #{tpu_custom_call.1} parent=1 // pred_fallthru
      _
    // Predicated region
    $region6: #{tpu_custom_call.1} parent=1 // pred_check
      _
    $region7: #{tpu_custom_call.1} parent=1 // pred_check_branch
      %12 = sbr.rel (0) target = $region9
    $region8: #{tpu_custom_call.1} parent=1 // pred_region
      _
    $region9: #{tpu_custom_call.1} parent=1 // pred_fallthru
      _
    // Predicated region
    $region10: #{tpu_custom_call.1} parent=1 // pred_check
      _
    $region11: #{tpu_custom_call.1} parent=1 // pred_check_branch
      %14 = sbr.rel (0) target = $region13
    $region12: #{tpu_custom_call.1} parent=1 // pred_region
      _
    $region13: #{tpu_custom_call.1} parent=1 // pred_fallthru
      _
    %v15 = vld [vmem:[%s0] sm:$0xff]
    %v16 = vld [vmem:[%s0 + $0x8] sm:$0xff]
    %v17 = vld [vmem:[%s0 + $0x10] sm:$0xff]
    %v18 = vld [vmem:[%s0 + $0x18] sm:$0xff]
    %v19 = vld [vmem:[%s0 + $0x20] sm:$0xff]
    %v20 = vld [vmem:[%s0 + $0x28] sm:$0xff]
    %v21 = vld [vmem:[%s0 + $0x30] sm:$0xff]
    %v22 = vld [vmem:[%s0 + $0x38] sm:$0xff]
    %v23 = vld [vmem:[%s0 + $0x40] sm:$0xff]
    %v24 = vld [vmem:[%s0 + $0x48] sm:$0xff]
    %v25 = vld [vmem:[%s0 + $0x50] sm:$0xff]
    %v26 = vld [vmem:[%s0 + $0x58] sm:$0xff]
    %v27 = vld [vmem:[%s0 + $0x60] sm:$0xff]
    %v28 = vld [vmem:[%s0 + $0x68] sm:$0xff]
    %v29 = vld [vmem:[%s0 + $0x70] sm:$0xff]
    %v30 = vld [vmem:[%s0 + $0x78] sm:$0xff]
    %v31 = vld [vmem:[%s0 + $0x80] sm:$0xff]
    %v32 = vld [vmem:[%s0 + $0x88] sm:$0xff]
    %v33 = vld [vmem:[%s0 + $0x90] sm:$0xff]
    %v34 = vld [vmem:[%s0 + $0x98] sm:$0xff]
    %v35 = vld [vmem:[%s0 + $0xa0] sm:$0xff]
    %v36 = vld [vmem:[%s0 + $0xa8] sm:$0xff]
    %v37 = vld [vmem:[%s0 + $0xb0] sm:$0xff]
    %v38 = vld [vmem:[%s0 + $0xb8] sm:$0xff]
    %v39 = vld [vmem:[%s0 + $0xc0] sm:$0xff]
    %v40 = vld [vmem:[%s0 + $0xc8] sm:$0xff]
    %v41 = vld [vmem:[%s0 + $0xd0] sm:$0xff]
    %v42 = vld [vmem:[%s0 + $0xd8] sm:$0xff]
    %v43 = vld [vmem:[%s0 + $0xe0] sm:$0xff]
    %v44 = vld [vmem:[%s0 + $0xe8] sm:$0xff]
    %v45 = vld [vmem:[%s0 + $0xf0] sm:$0xff]
    %v46 = vld [vmem:[%s0 + $0xf8] sm:$0xff]
    %v47 = vld [vmem:[%s0 + $0x100] sm:$0xff]
    %v48 = vld [vmem:[%s0 + $0x108] sm:$0xff]
    %v49 = vld [vmem:[%s0 + $0x110] sm:$0xff]
    %v50 = vld [vmem:[%s0 + $0x118] sm:$0xff]
    %v51 = vld [vmem:[%s0 + $0x120] sm:$0xff]
    %v52 = vld [vmem:[%s0 + $0x128] sm:$0xff]
    %v53 = vld [vmem:[%s0 + $0x130] sm:$0xff]
    %v54 = vld [vmem:[%s0 + $0x138] sm:$0xff]
    %v55 = vld [vmem:[%s0 + $0x140] sm:$0xff]
    %v56 = vld [vmem:[%s0 + $0x148] sm:$0xff]
    %v57 = vld [vmem:[%s0 + $0x150] sm:$0xff]
    %v58 = vld [vmem:[%s0 + $0x158] sm:$0xff]
    %v59 = vld [vmem:[%s0 + $0x160] sm:$0xff]
    %v60 = vld [vmem:[%s0 + $0x168] sm:$0xff]
    %v61 = vld [vmem:[%s0 + $0x170] sm:$0xff]
    %v62 = vld [vmem:[%s0 + $0x178] sm:$0xff]
    %v63 = vld [vmem:[%s0 + $0x180] sm:$0xff]
    %v64 = vld [vmem:[%s0 + $0x188] sm:$0xff]
    %v65 = vld [vmem:[%s0 + $0x190] sm:$0xff]
    %v66 = vld [vmem:[%s0 + $0x198] sm:$0xff]
    %v67 = vld [vmem:[%s0 + $0x1a0] sm:$0xff]
    %v68 = vld [vmem:[%s0 + $0x1a8] sm:$0xff]
    %v69 = vld [vmem:[%s0 + $0x1b0] sm:$0xff]
    %v70 = vld [vmem:[%s0 + $0x1b8] sm:$0xff]
    %v71 = vld [vmem:[%s0 + $0x1c0] sm:$0xff]
    %v72 = vld [vmem:[%s0 + $0x1c8] sm:$0xff]
    %v73 = vld [vmem:[%s0 + $0x1d0] sm:$0xff]
    %v74 = vld [vmem:[%s0 + $0x1d8] sm:$0xff]
    %v75 = vld [vmem:[%s0 + $0x1e0] sm:$0xff]
    %v76 = vld [vmem:[%s0 + $0x1e8] sm:$0xff]
    %v77 = vld [vmem:[%s0 + $0x1f0] sm:$0xf]
    %v78 = vld [vmem:[%s1] sm:$0xff]
    %v79 = vld [vmem:[%s1 + $0x8] sm:$0xff]
    %v80 = vld [vmem:[%s1 + $0x10] sm:$0xff]
    %v81 = vld [vmem:[%s1 + $0x18] sm:$0xff]
    %v82 = vld [vmem:[%s1 + $0x20] sm:$0xff]
    %v83 = vld [vmem:[%s1 + $0x28] sm:$0xff]
    %v84 = vld [vmem:[%s1 + $0x30] sm:$0xff]
    %v85 = vld [vmem:[%s1 + $0x38] sm:$0xff]
    %v86 = vld [vmem:[%s1 + $0x40] sm:$0xff]
    %v87 = vld [vmem:[%s1 + $0x48] sm:$0xff]
    %v88 = vld [vmem:[%s2] sm:$0x3]
    %v90 = vlaneseq
    %v91 = vshrl.u32 %v90, 7
    %v92 = vsub.s32 0, %v91
    %v93 = vrot.slane %v88, %v92
    %v94 = vlaneseq
    %v95 = vshrl.u32 %v94, 7
    %v96 = vsub.s32 1, %v95
    %v97 = vrot.slane %v88, %v96
    %vm100 = vcmask 326656
    %v102 = vsel %vm100, %v15, 0
    %v105 = vsel %vm100, %v16, 0
    %v108 = vsel %vm100, %v17, 0
    %v111 = vsel %vm100, %v18, 0
    %v114 = vsel %vm100, %v19, 0
    %v117 = vsel %vm100, %v20, 0
    %v120 = vsel %vm100, %v21, 0
    %v123 = vsel %vm100, %v22, 0
    %v126 = vsel %vm100, %v23, 0
    %v129 = vsel %vm100, %v24, 0
    %v132 = vsel %vm100, %v25, 0
    %v135 = vsel %vm100, %v26, 0
    %v138 = vsel %vm100, %v27, 0
    %v141 = vsel %vm100, %v28, 0
    %v144 = vsel %vm100, %v29, 0
    %v147 = vsel %vm100, %v30, 0
    %v150 = vsel %vm100, %v31, 0
    %v153 = vsel %vm100, %v32, 0
    %v156 = vsel %vm100, %v33, 0
    %v159 = vsel %vm100, %v34, 0
    %v162 = vsel %vm100, %v35, 0
    %v165 = vsel %vm100, %v36, 0
    %v168 = vsel %vm100, %v37, 0
    %v171 = vsel %vm100, %v38, 0
    %v174 = vsel %vm100, %v39, 0
    %v177 = vsel %vm100, %v40, 0
    %v180 = vsel %vm100, %v41, 0
    %v183 = vsel %vm100, %v42, 0
    %v186 = vsel %vm100, %v43, 0
    %v189 = vsel %vm100, %v44, 0
    %v192 = vsel %vm100, %v45, 0
    %v195 = vsel %vm100, %v46, 0
    %v198 = vsel %vm100, %v47, 0
    %v201 = vsel %vm100, %v48, 0
    %v204 = vsel %vm100, %v49, 0
    %v207 = vsel %vm100, %v50, 0
    %v210 = vsel %vm100, %v51, 0
    %v213 = vsel %vm100, %v52, 0
    %v216 = vsel %vm100, %v53, 0
    %v219 = vsel %vm100, %v54, 0
    %v222 = vsel %vm100, %v55, 0
    %v225 = vsel %vm100, %v56, 0
    %v228 = vsel %vm100, %v57, 0
    %v231 = vsel %vm100, %v58, 0
    %v234 = vsel %vm100, %v59, 0
    %v237 = vsel %vm100, %v60, 0
    %v240 = vsel %vm100, %v61, 0
    %v243 = vsel %vm100, %v62, 0
    %v246 = vsel %vm100, %v63, 0
    %v249 = vsel %vm100, %v64, 0
    %v252 = vsel %vm100, %v65, 0
    %v255 = vsel %vm100, %v66, 0
    %v258 = vsel %vm100, %v67, 0
    %v261 = vsel %vm100, %v68, 0
    %v264 = vsel %vm100, %v69, 0
    %v267 = vsel %vm100, %v70, 0
    %v270 = vsel %vm100, %v71, 0
    %v273 = vsel %vm100, %v72, 0
    %v276 = vsel %vm100, %v73, 0
    %v279 = vsel %vm100, %v74, 0
    %v282 = vsel %vm100, %v75, 0
    %v285 = vsel %vm100, %v76, 0
    %v288 = vsel %vm100, %v77, 0
    %290 = vmatprep.subr.mxu0 %v79
    %291 = vmatpush1.msra.mxu0 %v78
    %292 = vmatprep.subr.mxu0 %v81
    %293 = vmatpush1.msra.mxu0 %v80
    %294 = vmatprep.subr.mxu0 %v83
    %295 = vmatpush1.msra.mxu0 %v82
    %296 = vmatprep.subr.mxu0 %v85
    %297 = vmatpush1.msra.mxu0 %v84
    %298 = vmatprep.subr.mxu0 %v87
    %299 = vmatpush1.msra.mxu0 %v86
    %300 = vmatprep.subr.mxu0 0.0
    %301 = vmatpush1.msra.mxu0 0.0
    %302 = vmatprep.subr.mxu0 0.0
    %303 = vmatpush1.msra.mxu0 0.0
    %304 = vmatprep.subr.mxu0 0.0
    %305 = vmatpush1.msra.mxu0 0.0
    %306 = vmatprep.subr.mxu0 0.0
    %307 = vmatpush1.msra.mxu0 0.0
    %308 = vmatprep.subr.mxu0 0.0
    %309 = vmatpush1.msra.mxu0 0.0
    %310 = vmatprep.subr.mxu0 0.0
    %311 = vmatpush1.msra.mxu0 0.0
    %312 = vmatprep.subr.mxu0 0.0
    %313 = vmatpush1.msra.mxu0 0.0
    %314 = vmatprep.subr.mxu0 0.0
    %315 = vmatpush1.msra.mxu0 0.0
    %316 = vmatprep.subr.mxu0 0.0
    %317 = vmatpush1.msra.mxu0 0.0
    %318 = vmatprep.subr.mxu0 0.0
    %319 = vmatpush1.msra.mxu0 0.0
    %320 = vmatprep.subr.mxu0 0.0
    %321 = vmatpush1.msra.mxu0 0.0
    %322 = vmatprep.subr.mxu0 0.0
    %323 = vmatpush1.msra.mxu0 0.0
    %324 = vmatprep.subr.mxu0 0.0
    %325 = vmatpush1.msra.mxu0 0.0
    %326 = vmatprep.subr.mxu0 0.0
    %327 = vmatpush1.msra.mxu0 0.0
    %328 = vmatprep.subr.mxu0 0.0
    %329 = vmatpush1.msra.mxu0 0.0
    %330 = vmatprep.subr.mxu0 0.0
    %331 = vmatpush1.msra.mxu0 0.0
    %332 = vmatprep.subr.mxu0 0.0
    %333 = vmatpush1.msra.mxu0 0.0
    %334 = vmatprep.subr.mxu0 0.0
    %335 = vmatpush1.msra.mxu0 0.0
    %336 = vmatprep.subr.mxu0 0.0
    %337 = vmatpush1.msra.mxu0 0.0
    %338 = vmatprep.subr.mxu0 0.0
    %339 = vmatpush1.msra.mxu0 0.0
    %340 = vmatprep.subr.mxu0 0.0
    %341 = vmatpush1.msra.mxu0 0.0
    %342 = vmatprep.subr.mxu0 0.0
    %343 = vmatpush1.msra.mxu0 0.0
    %344 = vmatprep.subr.mxu0 0.0
    %345 = vmatpush1.msra.mxu0 0.0
    %346 = vmatprep.subr.mxu0 0.0
    %347 = vmatpush1.msra.mxu0 0.0
    %348 = vmatprep.subr.mxu0 0.0
    %349 = vmatpush1.msra.mxu0 0.0
    %350 = vmatprep.subr.mxu0 0.0
    %351 = vmatpush1.msra.mxu0 0.0
    %352 = vmatprep.subr.mxu0 0.0
    %353 = vmatpush1.msra.mxu0 0.0
    %354 = vmatprep.mubr.f32.mxu0 0.0
    %355 = vmatmul.mubr.f32.gmra.mrb[0].mxu0 %v102
    %v356 = vpop.f32.mrb[0].mxu0
    %v357 = vadd.f32 %v93, %v356
    %v358 = vpop.f32.mrb[0].mxu0
    %v359 = vadd.f32 %v97, %v358
    %360 = vmatprep.mubr.f32.mxu0 0.0
    %361 = vmatmul.mubr.f32.gmra.mrb[0].mxu0 %v105
    %v362 = vpop.f32.mrb[0].mxu0
    %v363 = vadd.f32 %v93, %v362
    %v364 = vpop.f32.mrb[0].mxu0
    %v365 = vadd.f32 %v97, %v364
    %366 = vmatprep.mubr.f32.mxu0 0.0
    %367 = vmatmul.mubr.f32.gmra.mrb[0].mxu0 %v108
    %v368 = vpop.f32.mrb[0].mxu0
    %v369 = vadd.f32 %v93, %v368
    %v370 = vpop.f32.mrb[0].mxu0
    %v371 = vadd.f32 %v97, %v370
    %372 = vmatprep.mubr.f32.mxu0 0.0
    %373 = vmatmul.mubr.f32.gmra.mrb[0].mxu0 %v111
    %v374 = vpop.f32.mrb[0].mxu0
    %v375 = vadd.f32 %v93, %v374
    %v376 = vpop.f32.mrb[0].mxu0
    %v377 = vadd.f32 %v97, %v376
    %378 = vmatprep.mubr.f32.mxu0 0.0
    %379 = vmatmul.mubr.f32.gmra.mrb[0].mxu0 %v114
    %v380 = vpop.f32.mrb[0].mxu0
    %v381 = vadd.f32 %v93, %v380
    %v382 = vpop.f32.mrb[0].mxu0
    %v383 = vadd.f32 %v97, %v382
    %384 = vmatprep.mubr.f32.mxu0 0.0
    %385 = vmatmul.mubr.f32.gmra.mrb[0].mxu0 %v117
    %v386 = vpop.f32.mrb[0].mxu0
    %v387 = vadd.f32 %v93, %v386
    %v388 = vpop.f32.mrb[0].mxu0
    %v389 = vadd.f32 %v97, %v388
    %390 = vmatprep.mubr.f32.mxu0 0.0
    %391 = vmatmul.mubr.f32.gmra.mrb[0].mxu0 %v120
    %v392 = vpop.f32.mrb[0].mxu0
    %v393 = vadd.f32 %v93, %v392
    %v394 = vpop.f32.mrb[0].mxu0
    %v395 = vadd.f32 %v97, %v394
    %396 = vmatprep.mubr.f32.mxu0 0.0
    %397 = vmatmul.mubr.f32.gmra.mrb[0].mxu0 %v123
    %v398 = vpop.f32.mrb[0].mxu0
    %v399 = vadd.f32 %v93, %v398
    %v400 = vpop.f32.mrb[0].mxu0
    %v401 = vadd.f32 %v97, %v400
    %402 = vmatprep.mubr.f32.mxu0 0.0
    %403 = vmatmul.mubr.f32.gmra.mrb[0].mxu0 %v126
    %v404 = vpop.f32.mrb[0].mxu0
    %v405 = vadd.f32 %v93, %v404
    %v406 = vpop.f32.mrb[0].mxu0
    %v407 = vadd.f32 %v97, %v406
    %408 = vmatprep.mubr.f32.mxu0 0.0
    %409 = vmatmul.mubr.f32.gmra.mrb[0].mxu0 %v129
    %v410 = vpop.f32.mrb[0].mxu0
    %v411 = vadd.f32 %v93, %v410
    %v412 = vpop.f32.mrb[0].mxu0
    %v413 = vadd.f32 %v97, %v412
    %414 = vmatprep.mubr.f32.mxu0 0.0
    %415 = vmatmul.mubr.f32.gmra.mrb[0].mxu0 %v132
    %v416 = vpop.f32.mrb[0].mxu0
    %v417 = vadd.f32 %v93, %v416
    %v418 = vpop.f32.mrb[0].mxu0
    %v419 = vadd.f32 %v97, %v418
    %420 = vmatprep.mubr.f32.mxu0 0.0
    %421 = vmatmul.mubr.f32.gmra.mrb[0].mxu0 %v135
    %v422 = vpop.f32.mrb[0].mxu0
    %v423 = vadd.f32 %v93, %v422
    %v424 = vpop.f32.mrb[0].mxu0
    %v425 = vadd.f32 %v97, %v424
    %426 = vmatprep.mubr.f32.mxu0 0.0
    %427 = vmatmul.mubr.f32.gmra.mrb[0].mxu0 %v138
    %v428 = vpop.f32.mrb[0].mxu0
    %v429 = vadd.f32 %v93, %v428
    %v430 = vpop.f32.mrb[0].mxu0
    %v431 = vadd.f32 %v97, %v430
    %432 = vmatprep.mubr.f32.mxu0 0.0
    %433 = vmatmul.mubr.f32.gmra.mrb[0].mxu0 %v141
    %v434 = vpop.f32.mrb[0].mxu0
    %v435 = vadd.f32 %v93, %v434
    %v436 = vpop.f32.mrb[0].mxu0
    %v437 = vadd.f32 %v97, %v436
    %438 = vmatprep.mubr.f32.mxu0 0.0
    %439 = vmatmul.mubr.f32.gmra.mrb[0].mxu0 %v144
    %v440 = vpop.f32.mrb[0].mxu0
    %v441 = vadd.f32 %v93, %v440
    %v442 = vpop.f32.mrb[0].mxu0
    %v443 = vadd.f32 %v97, %v442
    %444 = vmatprep.mubr.f32.mxu0 0.0
    %445 = vmatmul.mubr.f32.gmra.mrb[0].mxu0 %v147
    %v446 = vpop.f32.mrb[0].mxu0
    %v447 = vadd.f32 %v93, %v446
    %v448 = vpop.f32.mrb[0].mxu0
    %v449 = vadd.f32 %v97, %v448
    %450 = vmatprep.mubr.f32.mxu0 0.0
    %451 = vmatmul.mubr.f32.gmra.mrb[0].mxu0 %v150
    %v452 = vpop.f32.mrb[0].mxu0
    %v453 = vadd.f32 %v93, %v452
    %v454 = vpop.f32.mrb[0].mxu0
    %v455 = vadd.f32 %v97, %v454
    %456 = vmatprep.mubr.f32.mxu0 0.0
    %457 = vmatmul.mubr.f32.gmra.mrb[0].mxu0 %v153
    %v458 = vpop.f32.mrb[0].mxu0
    %v459 = vadd.f32 %v93, %v458
    %v460 = vpop.f32.mrb[0].mxu0
    %v461 = vadd.f32 %v97, %v460
    %462 = vmatprep.mubr.f32.mxu0 0.0
    %463 = vmatmul.mubr.f32.gmra.mrb[0].mxu0 %v156
    %v464 = vpop.f32.mrb[0].mxu0
    %v465 = vadd.f32 %v93, %v464
    %v466 = vpop.f32.mrb[0].mxu0
    %v467 = vadd.f32 %v97, %v466
    %468 = vmatprep.mubr.f32.mxu0 0.0
    %469 = vmatmul.mubr.f32.gmra.mrb[0].mxu0 %v159
    %v470 = vpop.f32.mrb[0].mxu0
    %v471 = vadd.f32 %v93, %v470
    %v472 = vpop.f32.mrb[0].mxu0
    %v473 = vadd.f32 %v97, %v472
    %474 = vmatprep.mubr.f32.mxu0 0.0
    %475 = vmatmul.mubr.f32.gmra.mrb[0].mxu0 %v162
    %v476 = vpop.f32.mrb[0].mxu0
    %v477 = vadd.f32 %v93, %v476
    %v478 = vpop.f32.mrb[0].mxu0
    %v479 = vadd.f32 %v97, %v478
    %480 = vmatprep.mubr.f32.mxu0 0.0
    %481 = vmatmul.mubr.f32.gmra.mrb[0].mxu0 %v165
    %v482 = vpop.f32.mrb[0].mxu0
    %v483 = vadd.f32 %v93, %v482
    %v484 = vpop.f32.mrb[0].mxu0
    %v485 = vadd.f32 %v97, %v484
    %486 = vmatprep.mubr.f32.mxu0 0.0
    %487 = vmatmul.mubr.f32.gmra.mrb[0].mxu0 %v168
    %v488 = vpop.f32.mrb[0].mxu0
    %v489 = vadd.f32 %v93, %v488
    %v490 = vpop.f32.mrb[0].mxu0
    %v491 = vadd.f32 %v97, %v490
    %492 = vmatprep.mubr.f32.mxu0 0.0
    %493 = vmatmul.mubr.f32.gmra.mrb[0].mxu0 %v171
    %v494 = vpop.f32.mrb[0].mxu0
    %v495 = vadd.f32 %v93, %v494
    %v496 = vpop.f32.mrb[0].mxu0
    %v497 = vadd.f32 %v97, %v496
    %498 = vmatprep.mubr.f32.mxu0 0.0
    %499 = vmatmul.mubr.f32.gmra.mrb[0].mxu0 %v174
    %v500 = vpop.f32.mrb[0].mxu0
    %v501 = vadd.f32 %v93, %v500
    %v502 = vpop.f32.mrb[0].mxu0
    %v503 = vadd.f32 %v97, %v502
    %504 = vmatprep.mubr.f32.mxu0 0.0
    %505 = vmatmul.mubr.f32.gmra.mrb[0].mxu0 %v177
    %v506 = vpop.f32.mrb[0].mxu0
    %v507 = vadd.f32 %v93, %v506
    %v508 = vpop.f32.mrb[0].mxu0
    %v509 = vadd.f32 %v97, %v508
    %510 = vmatprep.mubr.f32.mxu0 0.0
    %511 = vmatmul.mubr.f32.gmra.mrb[0].mxu0 %v180
    %v512 = vpop.f32.mrb[0].mxu0
    %v513 = vadd.f32 %v93, %v512
    %v514 = vpop.f32.mrb[0].mxu0
    %v515 = vadd.f32 %v97, %v514
    %516 = vmatprep.mubr.f32.mxu0 0.0
    %517 = vmatmul.mubr.f32.gmra.mrb[0].mxu0 %v183
    %v518 = vpop.f32.mrb[0].mxu0
    %v519 = vadd.f32 %v93, %v518
    %v520 = vpop.f32.mrb[0].mxu0
    %v521 = vadd.f32 %v97, %v520
    %522 = vmatprep.mubr.f32.mxu0 0.0
    %523 = vmatmul.mubr.f32.gmra.mrb[0].mxu0 %v186
    %v524 = vpop.f32.mrb[0].mxu0
    %v525 = vadd.f32 %v93, %v524
    %v526 = vpop.f32.mrb[0].mxu0
    %v527 = vadd.f32 %v97, %v526
    %528 = vmatprep.mubr.f32.mxu0 0.0
    %529 = vmatmul.mubr.f32.gmra.mrb[0].mxu0 %v189
    %v530 = vpop.f32.mrb[0].mxu0
    %v531 = vadd.f32 %v93, %v530
    %v532 = vpop.f32.mrb[0].mxu0
    %v533 = vadd.f32 %v97, %v532
    %534 = vmatprep.mubr.f32.mxu0 0.0
    %535 = vmatmul.mubr.f32.gmra.mrb[0].mxu0 %v192
    %v536 = vpop.f32.mrb[0].mxu0
    %v537 = vadd.f32 %v93, %v536
    %v538 = vpop.f32.mrb[0].mxu0
    %v539 = vadd.f32 %v97, %v538
    %540 = vmatprep.mubr.f32.mxu0 0.0
    %541 = vmatmul.mubr.f32.gmra.mrb[0].mxu0 %v195
    %v542 = vpop.f32.mrb[0].mxu0
    %v543 = vadd.f32 %v93, %v542
    %v544 = vpop.f32.mrb[0].mxu0
    %v545 = vadd.f32 %v97, %v544
    %546 = vmatprep.mubr.f32.mxu0 0.0
    %547 = vmatmul.mubr.f32.gmra.mrb[0].mxu0 %v198
    %v548 = vpop.f32.mrb[0].mxu0
    %v549 = vadd.f32 %v93, %v548
    %v550 = vpop.f32.mrb[0].mxu0
    %v551 = vadd.f32 %v97, %v550
    %552 = vmatprep.mubr.f32.mxu0 0.0
    %553 = vmatmul.mubr.f32.gmra.mrb[0].mxu0 %v201
    %v554 = vpop.f32.mrb[0].mxu0
    %v555 = vadd.f32 %v93, %v554
    %v556 = vpop.f32.mrb[0].mxu0
    %v557 = vadd.f32 %v97, %v556
    %558 = vmatprep.mubr.f32.mxu0 0.0
    %559 = vmatmul.mubr.f32.gmra.mrb[0].mxu0 %v204
    %v560 = vpop.f32.mrb[0].mxu0
    %v561 = vadd.f32 %v93, %v560
    %v562 = vpop.f32.mrb[0].mxu0
    %v563 = vadd.f32 %v97, %v562
    %564 = vmatprep.mubr.f32.mxu0 0.0
    %565 = vmatmul.mubr.f32.gmra.mrb[0].mxu0 %v207
    %v566 = vpop.f32.mrb[0].mxu0
    %v567 = vadd.f32 %v93, %v566
    %v568 = vpop.f32.mrb[0].mxu0
    %v569 = vadd.f32 %v97, %v568
    %570 = vmatprep.mubr.f32.mxu0 0.0
    %571 = vmatmul.mubr.f32.gmra.mrb[0].mxu0 %v210
    %v572 = vpop.f32.mrb[0].mxu0
    %v573 = vadd.f32 %v93, %v572
    %v574 = vpop.f32.mrb[0].mxu0
    %v575 = vadd.f32 %v97, %v574
    %576 = vmatprep.mubr.f32.mxu0 0.0
    %577 = vmatmul.mubr.f32.gmra.mrb[0].mxu0 %v213
    %v578 = vpop.f32.mrb[0].mxu0
    %v579 = vadd.f32 %v93, %v578
    %v580 = vpop.f32.mrb[0].mxu0
    %v581 = vadd.f32 %v97, %v580
    %582 = vmatprep.mubr.f32.mxu0 0.0
    %583 = vmatmul.mubr.f32.gmra.mrb[0].mxu0 %v216
    %v584 = vpop.f32.mrb[0].mxu0
    %v585 = vadd.f32 %v93, %v584
    %v586 = vpop.f32.mrb[0].mxu0
    %v587 = vadd.f32 %v97, %v586
    %588 = vmatprep.mubr.f32.mxu0 0.0
    %589 = vmatmul.mubr.f32.gmra.mrb[0].mxu0 %v219
    %v590 = vpop.f32.mrb[0].mxu0
    %v591 = vadd.f32 %v93, %v590
    %v592 = vpop.f32.mrb[0].mxu0
    %v593 = vadd.f32 %v97, %v592
    %594 = vmatprep.mubr.f32.mxu0 0.0
    %595 = vmatmul.mubr.f32.gmra.mrb[0].mxu0 %v222
    %v596 = vpop.f32.mrb[0].mxu0
    %v597 = vadd.f32 %v93, %v596
    %v598 = vpop.f32.mrb[0].mxu0
    %v599 = vadd.f32 %v97, %v598
    %600 = vmatprep.mubr.f32.mxu0 0.0
    %601 = vmatmul.mubr.f32.gmra.mrb[0].mxu0 %v225
    %v602 = vpop.f32.mrb[0].mxu0
    %v603 = vadd.f32 %v93, %v602
    %v604 = vpop.f32.mrb[0].mxu0
    %v605 = vadd.f32 %v97, %v604
    %606 = vmatprep.mubr.f32.mxu0 0.0
    %607 = vmatmul.mubr.f32.gmra.mrb[0].mxu0 %v228
    %v608 = vpop.f32.mrb[0].mxu0
    %v609 = vadd.f32 %v93, %v608
    %v610 = vpop.f32.mrb[0].mxu0
    %v611 = vadd.f32 %v97, %v610
    %612 = vmatprep.mubr.f32.mxu0 0.0
    %613 = vmatmul.mubr.f32.gmra.mrb[0].mxu0 %v231
    %v614 = vpop.f32.mrb[0].mxu0
    %v615 = vadd.f32 %v93, %v614
    %v616 = vpop.f32.mrb[0].mxu0
    %v617 = vadd.f32 %v97, %v616
    %618 = vmatprep.mubr.f32.mxu0 0.0
    %619 = vmatmul.mubr.f32.gmra.mrb[0].mxu0 %v234
    %v620 = vpop.f32.mrb[0].mxu0
    %v621 = vadd.f32 %v93, %v620
    %v622 = vpop.f32.mrb[0].mxu0
    %v623 = vadd.f32 %v97, %v622
    %624 = vmatprep.mubr.f32.mxu0 0.0
    %625 = vmatmul.mubr.f32.gmra.mrb[0].mxu0 %v237
    %v626 = vpop.f32.mrb[0].mxu0
    %v627 = vadd.f32 %v93, %v626
    %v628 = vpop.f32.mrb[0].mxu0
    %v629 = vadd.f32 %v97, %v628
    %630 = vmatprep.mubr.f32.mxu0 0.0
    %631 = vmatmul.mubr.f32.gmra.mrb[0].mxu0 %v240
    %v632 = vpop.f32.mrb[0].mxu0
    %v633 = vadd.f32 %v93, %v632
    %v634 = vpop.f32.mrb[0].mxu0
    %v635 = vadd.f32 %v97, %v634
    %636 = vmatprep.mubr.f32.mxu0 0.0
    %637 = vmatmul.mubr.f32.gmra.mrb[0].mxu0 %v243
    %v638 = vpop.f32.mrb[0].mxu0
    %v639 = vadd.f32 %v93, %v638
    %v640 = vpop.f32.mrb[0].mxu0
    %v641 = vadd.f32 %v97, %v640
    %642 = vmatprep.mubr.f32.mxu0 0.0
    %643 = vmatmul.mubr.f32.gmra.mrb[0].mxu0 %v246
    %v644 = vpop.f32.mrb[0].mxu0
    %v645 = vadd.f32 %v93, %v644
    %v646 = vpop.f32.mrb[0].mxu0
    %v647 = vadd.f32 %v97, %v646
    %648 = vmatprep.mubr.f32.mxu0 0.0
    %649 = vmatmul.mubr.f32.gmra.mrb[0].mxu0 %v249
    %v650 = vpop.f32.mrb[0].mxu0
    %v651 = vadd.f32 %v93, %v650
    %v652 = vpop.f32.mrb[0].mxu0
    %v653 = vadd.f32 %v97, %v652
    %654 = vmatprep.mubr.f32.mxu0 0.0
    %655 = vmatmul.mubr.f32.gmra.mrb[0].mxu0 %v252
    %v656 = vpop.f32.mrb[0].mxu0
    %v657 = vadd.f32 %v93, %v656
    %v658 = vpop.f32.mrb[0].mxu0
    %v659 = vadd.f32 %v97, %v658
    %660 = vmatprep.mubr.f32.mxu0 0.0
    %661 = vmatmul.mubr.f32.gmra.mrb[0].mxu0 %v255
    %v662 = vpop.f32.mrb[0].mxu0
    %v663 = vadd.f32 %v93, %v662
    %v664 = vpop.f32.mrb[0].mxu0
    %v665 = vadd.f32 %v97, %v664
    %666 = vmatprep.mubr.f32.mxu0 0.0
    %667 = vmatmul.mubr.f32.gmra.mrb[0].mxu0 %v258
    %v668 = vpop.f32.mrb[0].mxu0
    %v669 = vadd.f32 %v93, %v668
    %v670 = vpop.f32.mrb[0].mxu0
    %v671 = vadd.f32 %v97, %v670
    %672 = vmatprep.mubr.f32.mxu0 0.0
    %673 = vmatmul.mubr.f32.gmra.mrb[0].mxu0 %v261
    %v674 = vpop.f32.mrb[0].mxu0
    %v675 = vadd.f32 %v93, %v674
    %v676 = vpop.f32.mrb[0].mxu0
    %v677 = vadd.f32 %v97, %v676
    %678 = vmatprep.mubr.f32.mxu0 0.0
    %679 = vmatmul.mubr.f32.gmra.mrb[0].mxu0 %v264
    %v680 = vpop.f32.mrb[0].mxu0
    %v681 = vadd.f32 %v93, %v680
    %v682 = vpop.f32.mrb[0].mxu0
    %v683 = vadd.f32 %v97, %v682
    %684 = vmatprep.mubr.f32.mxu0 0.0
    %685 = vmatmul.mubr.f32.gmra.mrb[0].mxu0 %v267
    %v686 = vpop.f32.mrb[0].mxu0
    %v687 = vadd.f32 %v93, %v686
    %v688 = vpop.f32.mrb[0].mxu0
    %v689 = vadd.f32 %v97, %v688
    %690 = vmatprep.mubr.f32.mxu0 0.0
    %691 = vmatmul.mubr.f32.gmra.mrb[0].mxu0 %v270
    %v692 = vpop.f32.mrb[0].mxu0
    %v693 = vadd.f32 %v93, %v692
    %v694 = vpop.f32.mrb[0].mxu0
    %v695 = vadd.f32 %v97, %v694
    %696 = vmatprep.mubr.f32.mxu0 0.0
    %697 = vmatmul.mubr.f32.gmra.mrb[0].mxu0 %v273
    %v698 = vpop.f32.mrb[0].mxu0
    %v699 = vadd.f32 %v93, %v698
    %v700 = vpop.f32.mrb[0].mxu0
    %v701 = vadd.f32 %v97, %v700
    %702 = vmatprep.mubr.f32.mxu0 0.0
    %703 = vmatmul.mubr.f32.gmra.mrb[0].mxu0 %v276
    %v704 = vpop.f32.mrb[0].mxu0
    %v705 = vadd.f32 %v93, %v704
    %v706 = vpop.f32.mrb[0].mxu0
    %v707 = vadd.f32 %v97, %v706
    %708 = vmatprep.mubr.f32.mxu0 0.0
    %709 = vmatmul.mubr.f32.gmra.mrb[0].mxu0 %v279
    %v710 = vpop.f32.mrb[0].mxu0
    %v711 = vadd.f32 %v93, %v710
    %v712 = vpop.f32.mrb[0].mxu0
    %v713 = vadd.f32 %v97, %v712
    %714 = vmatprep.mubr.f32.mxu0 0.0
    %715 = vmatmul.mubr.f32.gmra.mrb[0].mxu0 %v282
    %v716 = vpop.f32.mrb[0].mxu0
    %v717 = vadd.f32 %v93, %v716
    %v718 = vpop.f32.mrb[0].mxu0
    %v719 = vadd.f32 %v97, %v718
    %720 = vmatprep.mubr.f32.mxu0 0.0
    %721 = vmatmul.mubr.f32.gmra.mrb[0].mxu0 %v285
    %v722 = vpop.f32.mrb[0].mxu0
    %v723 = vadd.f32 %v93, %v722
    %v724 = vpop.f32.mrb[0].mxu0
    %v725 = vadd.f32 %v97, %v724
    %726 = vmatprep.mubr.f32.mxu0 0.0
    %727 = vmatmul.mubr.f32.gmra.mrb[0].mxu0 %v288
    %v728 = vpop.f32.mrb[0].mxu0
    %v729 = vadd.f32 %v93, %v728
    %v730 = vpop.f32.mrb[0].mxu0
    %v731 = vadd.f32 %v97, %v730
    %732 = vdwg.mxu0
    %733 = vst [vmem:[#allocation2] sm:$0xff] %v357
    %734 = vst [vmem:[#allocation2 + $0x8] sm:$0xff] %v359
    %735 = vst [vmem:[#allocation2 + $0x10] sm:$0xff] %v363
    %736 = vst [vmem:[#allocation2 + $0x18] sm:$0xff] %v365
    %737 = vst [vmem:[#allocation2 + $0x20] sm:$0xff] %v369
    %738 = vst [vmem:[#allocation2 + $0x28] sm:$0xff] %v371
    %739 = vst [vmem:[#allocation2 + $0x30] sm:$0xff] %v375
    %740 = vst [vmem:[#allocation2 + $0x38] sm:$0xff] %v377
    %741 = vst [vmem:[#allocation2 + $0x40] sm:$0xff] %v381
    %742 = vst [vmem:[#allocation2 + $0x48] sm:$0xff] %v383
    %743 = vst [vmem:[#allocation2 + $0x50] sm:$0xff] %v387
    %744 = vst [vmem:[#allocation2 + $0x58] sm:$0xff] %v389
    %745 = vst [vmem:[#allocation2 + $0x60] sm:$0xff] %v393
    %746 = vst [vmem:[#allocation2 + $0x68] sm:$0xff] %v395
    %747 = vst [vmem:[#allocation2 + $0x70] sm:$0xff] %v399
    %748 = vst [vmem:[#allocation2 + $0x78] sm:$0xff] %v401
    %749 = vst [vmem:[#allocation2 + $0x80] sm:$0xff] %v405
    %750 = vst [vmem:[#allocation2 + $0x88] sm:$0xff] %v407
    %751 = vst [vmem:[#allocation2 + $0x90] sm:$0xff] %v411
    %752 = vst [vmem:[#allocation2 + $0x98] sm:$0xff] %v413
    %753 = vst [vmem:[#allocation2 + $0xa0] sm:$0xff] %v417
    %754 = vst [vmem:[#allocation2 + $0xa8] sm:$0xff] %v419
    %755 = vst [vmem:[#allocation2 + $0xb0] sm:$0xff] %v423
    %756 = vst [vmem:[#allocation2 + $0xb8] sm:$0xff] %v425
    %757 = vst [vmem:[#allocation2 + $0xc0] sm:$0xff] %v429
    %758 = vst [vmem:[#allocation2 + $0xc8] sm:$0xff] %v431
    %759 = vst [vmem:[#allocation2 + $0xd0] sm:$0xff] %v435
    %760 = vst [vmem:[#allocation2 + $0xd8] sm:$0xff] %v437
    %761 = vst [vmem:[#allocation2 + $0xe0] sm:$0xff] %v441
    %762 = vst [vmem:[#allocation2 + $0xe8] sm:$0xff] %v443
    %763 = vst [vmem:[#allocation2 + $0xf0] sm:$0xff] %v447
    %764 = vst [vmem:[#allocation2 + $0xf8] sm:$0xff] %v449
    %765 = vst [vmem:[#allocation2 + $0x100] sm:$0xff] %v453
    %766 = vst [vmem:[#allocation2 + $0x108] sm:$0xff] %v455
    %767 = vst [vmem:[#allocation2 + $0x110] sm:$0xff] %v459
    %768 = vst [vmem:[#allocation2 + $0x118] sm:$0xff] %v461
    %769 = vst [vmem:[#allocation2 + $0x120] sm:$0xff] %v465
    %770 = vst [vmem:[#allocation2 + $0x128] sm:$0xff] %v467
    %771 = vst [vmem:[#allocation2 + $0x130] sm:$0xff] %v471
    %772 = vst [vmem:[#allocation2 + $0x138] sm:$0xff] %v473
    %773 = vst [vmem:[#allocation2 + $0x140] sm:$0xff] %v477
    %774 = vst [vmem:[#allocation2 + $0x148] sm:$0xff] %v479
    %775 = vst [vmem:[#allocation2 + $0x150] sm:$0xff] %v483
    %776 = vst [vmem:[#allocation2 + $0x158] sm:$0xff] %v485
    %777 = vst [vmem:[#allocation2 + $0x160] sm:$0xff] %v489
    %778 = vst [vmem:[#allocation2 + $0x168] sm:$0xff] %v491
    %779 = vst [vmem:[#allocation2 + $0x170] sm:$0xff] %v495
    %780 = vst [vmem:[#allocation2 + $0x178] sm:$0xff] %v497
    %781 = vst [vmem:[#allocation2 + $0x180] sm:$0xff] %v501
    %782 = vst [vmem:[#allocation2 + $0x188] sm:$0xff] %v503
    %783 = vst [vmem:[#allocation2 + $0x190] sm:$0xff] %v507
    %784 = vst [vmem:[#allocation2 + $0x198] sm:$0xff] %v509
    %785 = vst [vmem:[#allocation2 + $0x1a0] sm:$0xff] %v513
    %786 = vst [vmem:[#allocation2 + $0x1a8] sm:$0xff] %v515
    %787 = vst [vmem:[#allocation2 + $0x1b0] sm:$0xff] %v519
    %788 = vst [vmem:[#allocation2 + $0x1b8] sm:$0xff] %v521
    %789 = vst [vmem:[#allocation2 + $0x1c0] sm:$0xff] %v525
    %790 = vst [vmem:[#allocation2 + $0x1c8] sm:$0xff] %v527
    %791 = vst [vmem:[#allocation2 + $0x1d0] sm:$0xff] %v531
    %792 = vst [vmem:[#allocation2 + $0x1d8] sm:$0xff] %v533
    %793 = vst [vmem:[#allocation2 + $0x1e0] sm:$0xff] %v537
    %794 = vst [vmem:[#allocation2 + $0x1e8] sm:$0xff] %v539
    %795 = vst [vmem:[#allocation2 + $0x1f0] sm:$0xff] %v543
    %796 = vst [vmem:[#allocation2 + $0x1f8] sm:$0xff] %v545
    %797 = vst [vmem:[#allocation2 + $0x200] sm:$0xff] %v549
    %798 = vst [vmem:[#allocation2 + $0x208] sm:$0xff] %v551
    %799 = vst [vmem:[#allocation2 + $0x210] sm:$0xff] %v555
    %800 = vst [vmem:[#allocation2 + $0x218] sm:$0xff] %v557
    %801 = vst [vmem:[#allocation2 + $0x220] sm:$0xff] %v561
    %802 = vst [vmem:[#allocation2 + $0x228] sm:$0xff] %v563
    %803 = vst [vmem:[#allocation2 + $0x230] sm:$0xff] %v567
    %804 = vst [vmem:[#allocation2 + $0x238] sm:$0xff] %v569
    %805 = vst [vmem:[#allocation2 + $0x240] sm:$0xff] %v573
    %806 = vst [vmem:[#allocation2 + $0x248] sm:$0xff] %v575
    %807 = vst [vmem:[#allocation2 + $0x250] sm:$0xff] %v579
    %808 = vst [vmem:[#allocation2 + $0x258] sm:$0xff] %v581
    %809 = vst [vmem:[#allocation2 + $0x260] sm:$0xff] %v585
    %810 = vst [vmem:[#allocation2 + $0x268] sm:$0xff] %v587
    %811 = vst [vmem:[#allocation2 + $0x270] sm:$0xff] %v591
    %812 = vst [vmem:[#allocation2 + $0x278] sm:$0xff] %v593
    %813 = vst [vmem:[#allocation2 + $0x280] sm:$0xff] %v597
    %814 = vst [vmem:[#allocation2 + $0x288] sm:$0xff] %v599
    %815 = vst [vmem:[#allocation2 + $0x290] sm:$0xff] %v603
    %816 = vst [vmem:[#allocation2 + $0x298] sm:$0xff] %v605
    %817 = vst [vmem:[#allocation2 + $0x2a0] sm:$0xff] %v609
    %818 = vst [vmem:[#allocation2 + $0x2a8] sm:$0xff] %v611
    %819 = vst [vmem:[#allocation2 + $0x2b0] sm:$0xff] %v615
    %820 = vst [vmem:[#allocation2 + $0x2b8] sm:$0xff] %v617
    %821 = vst [vmem:[#allocation2 + $0x2c0] sm:$0xff] %v621
    %822 = vst [vmem:[#allocation2 + $0x2c8] sm:$0xff] %v623
    %823 = vst [vmem:[#allocation2 + $0x2d0] sm:$0xff] %v627
    %824 = vst [vmem:[#allocation2 + $0x2d8] sm:$0xff] %v629
    %825 = vst [vmem:[#allocation2 + $0x2e0] sm:$0xff] %v633
    %826 = vst [vmem:[#allocation2 + $0x2e8] sm:$0xff] %v635
    %827 = vst [vmem:[#allocation2 + $0x2f0] sm:$0xff] %v639
    %828 = vst [vmem:[#allocation2 + $0x2f8] sm:$0xff] %v641
    %829 = vst [vmem:[#allocation2 + $0x300] sm:$0xff] %v645
    %830 = vst [vmem:[#allocation2 + $0x308] sm:$0xff] %v647
    %831 = vst [vmem:[#allocation2 + $0x310] sm:$0xff] %v651
    %832 = vst [vmem:[#allocation2 + $0x318] sm:$0xff] %v653
    %833 = vst [vmem:[#allocation2 + $0x320] sm:$0xff] %v657
    %834 = vst [vmem:[#allocation2 + $0x328] sm:$0xff] %v659
    %835 = vst [vmem:[#allocation2 + $0x330] sm:$0xff] %v663
    %836 = vst [vmem:[#allocation2 + $0x338] sm:$0xff] %v665
    %837 = vst [vmem:[#allocation2 + $0x340] sm:$0xff] %v669
    %838 = vst [vmem:[#allocation2 + $0x348] sm:$0xff] %v671
    %839 = vst [vmem:[#allocation2 + $0x350] sm:$0xff] %v675
    %840 = vst [vmem:[#allocation2 + $0x358] sm:$0xff] %v677
    %841 = vst [vmem:[#allocation2 + $0x360] sm:$0xff] %v681
    %842 = vst [vmem:[#allocation2 + $0x368] sm:$0xff] %v683
    %843 = vst [vmem:[#allocation2 + $0x370] sm:$0xff] %v687
    %844 = vst [vmem:[#allocation2 + $0x378] sm:$0xff] %v689
    %845 = vst [vmem:[#allocation2 + $0x380] sm:$0xff] %v693
    %846 = vst [vmem:[#allocation2 + $0x388] sm:$0xff] %v695
    %847 = vst [vmem:[#allocation2 + $0x390] sm:$0xff] %v699
    %848 = vst [vmem:[#allocation2 + $0x398] sm:$0xff] %v701
    %849 = vst [vmem:[#allocation2 + $0x3a0] sm:$0xff] %v705
    %850 = vst [vmem:[#allocation2 + $0x3a8] sm:$0xff] %v707
    %851 = vst [vmem:[#allocation2 + $0x3b0] sm:$0xff] %v711
    %852 = vst [vmem:[#allocation2 + $0x3b8] sm:$0xff] %v713
    %853 = vst [vmem:[#allocation2 + $0x3c0] sm:$0xff] %v717
    %854 = vst [vmem:[#allocation2 + $0x3c8] sm:$0xff] %v719
    %855 = vst [vmem:[#allocation2 + $0x3d0] sm:$0xff] %v723
    %856 = vst [vmem:[#allocation2 + $0x3d8] sm:$0xff] %v725
    %857 = vst [vmem:[#allocation2 + $0x3e0] sm:$0xf] %v729
    %858 = vst [vmem:[#allocation2 + $0x3e8] sm:$0xf] %v731
    // Predicated region
    $region14: #{tpu_custom_call.1} parent=1 // pred_check
      _
    $region15: #{tpu_custom_call.1} parent=1 // pred_check_branch
      %860 = sbr.rel (0) target = $region17
    $region16: #{tpu_custom_call.1} parent=1 // pred_region
      %s862 = ssub.s32 16128, 16128
      %863 = vsyncadd [#allocation3], %s862
      %s864 = sshll.u32 [#allocation2], 4
      %s865 = int_to_ptr.vmem [resolvable:$true] %s864
      %870 = dma.vmem_to_hbm [thread:$0]  %s865, 16128, %s3, [#allocation3], 256, 256, 16
    $region17: #{tpu_custom_call.1} parent=1 // pred_fallthru
      _
    // Predicated region
    $region18: #{tpu_custom_call.1} parent=1 // pred_check
      _
    $region19: #{tpu_custom_call.1} parent=1 // pred_check_branch
      %872 = sbr.rel (0) target = $region21
    $region20: #{tpu_custom_call.1} parent=1 // pred_region
      %873 = dma.done [#allocation3], 16128
    $region21: #{tpu_custom_call.1} parent=1 // pred_fallthru
      _
    %874 = vsyncpa [#allocation3], 1

</llo_original>
